<compile_context>
chip_gen: v7x
topology: tpu7x:2x2x1
jax: 0.10.0
libtpu: 0.0.40
codegen_flags: <defaults>
</compile_context>

<pallas_src>
import functools

import jax
import jax.numpy as jnp
from jax.experimental import pallas as pl
from jax.experimental.pallas import tpu as pltpu

_LANE = 128
_SUBLANE = 8
_NUM_CORES = 2                       # leading "parallel" grid axis (v7x has 2 TCs/chip)
_VMEM_BUDGET = 24 * 1024 * 1024      # double-buffered working-set target (<= 32 MiB limit)


def _round_up(x, m):
    return ((x + m - 1) // m) * m


def _edl_kernel(logits_ref, target_ref, sum_ref, fg_ref, acc_ref, cnt_ref, *,
                num_edges, blocks_per_core):
    """Rows layout: logits [tm, C] (classes on lanes), target [tm, 1] int32.

    Grid is (cores, blocks_per_core); core c handles global blocks
    [c*blocks_per_core, (c+1)*blocks_per_core) and writes its (sum_CE, M_FG)
    partial to output slot c.
    """
    c = pl.program_id(0)
    i = pl.program_id(1)
    tm, ncls = logits_ref.shape

    @pl.when(i == 0)
    def _init():
        acc_ref[...] = jnp.zeros_like(acc_ref)
        cnt_ref[...] = jnp.zeros_like(cnt_ref)

    # Logical (unclamped) global block index -> global row offsets for masking.
    g = c * blocks_per_core + i
    row_idx = jax.lax.broadcasted_iota(jnp.int32, (tm, 1), 0) + g * tm
    valid = row_idx < num_edges                                   # [tm, 1] bool

    logits = logits_ref[...].astype(jnp.float32)                  # [tm, C]
    tgt = target_ref[...]                                         # [tm, 1] int32

    row_max = jnp.max(logits, axis=1, keepdims=True)              # [tm, 1]
    shifted = logits - row_max                                    # reused twice
    sum_exp = jnp.sum(jnp.exp(shifted), axis=1, keepdims=True)    # [tm, 1]
    cls_idx = jax.lax.broadcasted_iota(jnp.int32, (1, ncls), 1)   # [1, C] (broadcast vs tgt)
    tgt_shift = jnp.sum(jnp.where(cls_idx == tgt, shifted, 0.0),
                        axis=1, keepdims=True)                    # shifted[r, tgt[r]]

    ce = jnp.where(valid, jnp.log(sum_exp) - tgt_shift, 0.0)      # [tm, 1]
    fg = jnp.where(valid & (tgt > 0), 1.0, 0.0)                   # [tm, 1]

    acc_ref[...] += jnp.sum(ce, axis=0, keepdims=True)
    cnt_ref[...] += jnp.sum(fg, axis=0, keepdims=True)

    @pl.when(i == pl.num_programs(1) - 1)
    def _finalize():
        # Broadcast to a full 512 B lane row so each core's writeback touches a
        # disjoint, aligned HBM region; wrapper reads [:, 0, 0].
        sum_ref[...] = jnp.broadcast_to(acc_ref[...], sum_ref.shape)
        fg_ref[...] = jnp.broadcast_to(cnt_ref[...], fg_ref.shape)


def edge_density_loss(logits, target, loss_weight=1.0, block_edges=None):
    """logits: [M, C] float (any float dtype), target: [M] int. Returns scalar f32 loss."""
    del loss_weight  # stored but unused by the reference forward()
    M, C = logits.shape
    target = target.astype(jnp.int32).reshape(M, 1)
    itemsize = jnp.dtype(logits.dtype).itemsize

    # Size blocks by bytes (double-buffered, lane-padded): logits row + int32 target row.
    # TODO(synk): stream target lane-dense ([1, M] blocks + in-kernel relayout) to drop its
    # 512 B/row VMEM padding, which halves the usable block size when C is narrow.
    c_lanes = _round_up(C, _LANE)
    bytes_per_edge = 2 * (c_lanes * itemsize + _LANE * 4)
    if block_edges is None:
        block_edges = max(_SUBLANE, _VMEM_BUDGET // bytes_per_edge)
    if M <= block_edges:
        tm = M
    else:
        tm = max(_SUBLANE, (block_edges // _SUBLANE) * _SUBLANE)

    total_blocks = pl.cdiv(M, tm)
    bpc = pl.cdiv(total_blocks, _NUM_CORES)   # blocks per core
    last_block = total_blocks - 1

    def _in_map(c, i):
        # Clamp so duplicated tail blocks (odd block count / tiny M) stay in bounds;
        # they are fully masked out inside the kernel via the global-row mask.
        return (jnp.minimum(c * bpc + i, last_block), 0)

    kernel = functools.partial(_edl_kernel, num_edges=M, blocks_per_core=bpc)

    sums, fgs = pl.pallas_call(
        kernel,
        out_shape=(jax.ShapeDtypeStruct((_NUM_CORES, 1, _LANE), jnp.float32),
                   jax.ShapeDtypeStruct((_NUM_CORES, 1, _LANE), jnp.float32)),
        grid=(_NUM_CORES, bpc),
        in_specs=[pl.BlockSpec((tm, C), _in_map),
                  pl.BlockSpec((tm, 1), _in_map)],
        out_specs=(pl.BlockSpec((None, 1, _LANE), lambda c, i: (c, 0, 0)),
                   pl.BlockSpec((None, 1, _LANE), lambda c, i: (c, 0, 0))),
        scratch_shapes=[pltpu.VMEM((1, 1), jnp.float32),   # running sum of per-edge CE
                        pltpu.VMEM((1, 1), jnp.float32)],  # running M_FG count
        compiler_params=pltpu.CompilerParams(
            dimension_semantics=("parallel", "arbitrary"),
            vmem_limit_bytes=32 * 1024 * 1024,             # safe on v5e/v6e/v7x (per core)
        ),
        cost_estimate=pl.CostEstimate(
            flops=5 * M * C,
            transcendentals=M * C,
            bytes_accessed=M * C * itemsize + 4 * M + 2 * _NUM_CORES * _LANE * 4,
        ),
    )(logits, target)

    sum_ce = jnp.sum(sums[:, 0, 0])
    m_fg = jnp.sum(fgs[:, 0, 0])
    return sum_ce / jnp.maximum(m_fg, 1.0)


if __name__ == "__main__":
    key = jax.random.PRNGKey(0)

    def reference(logits, target):
        lg = logits.astype(jnp.float32)
        lse = jax.nn.logsumexp(lg, axis=-1)
        ce = lse - jnp.take_along_axis(lg, target[:, None].astype(jnp.int32), axis=-1)[:, 0]
        mean_ce = jnp.mean(ce)
        m = lg.shape[0]
        m_fg = jnp.sum(target > 0).astype(jnp.float32)
        w = jnp.where(m_fg > 0,
                      jnp.ones((m,), jnp.float32) / jnp.maximum(m_fg, 1.0),
                      jnp.ones((m,), jnp.float32))
        return jnp.sum(mean_ce * w)

    # 1) Narrow-C bf16: multi-block grid spanning both "cores" (grid (2,2)), masked
    #    partial last block + one clamped duplicate block, native-bf16 streaming.
    k1, k2, key = jax.random.split(key, 3)
    M1, C1 = 300, 32
    logits1 = jax.random.normal(k1, (M1, C1), dtype=jnp.float32).astype(jnp.bfloat16)
    target1 = jax.random.randint(k2, (M1,), 0, C1, dtype=jnp.int32)
    target1 = target1.at[0].set(0).at[1].set(0).at[2].set(3)  # mix of bg and fg labels
    out1 = jax.block_until_ready(edge_density_loss(logits1, target1, block_edges=128))
    ref1 = reference(logits1, target1)
    assert jnp.allclose(out1, ref1, rtol=5e-5, atol=5e-5), (out1, ref1)

    # 2) C = 128 f32: multi-block grid with a masked partial last block on core 1.
    k3, k4, key = jax.random.split(key, 3)
    M2, C2 = 40, 128
    logits2 = jax.random.normal(k3, (M2, C2), dtype=jnp.float32)
    target2 = jax.random.randint(k4, (M2,), 0, C2, dtype=jnp.int32)
    out2 = jax.block_until_ready(edge_density_loss(logits2, target2, block_edges=16))
    ref2 = reference(logits2, target2)
    assert jnp.allclose(out2, ref2, rtol=5e-5, atol=5e-5), (out2, ref2)

    # 3) M_FG == 0 edge case: all-background labels -> loss == sum of per-edge CE.
    #    Single real block; core 1's clamped block is fully masked and contributes 0.
    k5, key = jax.random.split(key)
    M3, C3 = 16, 32
    logits3 = jax.random.normal(k5, (M3, C3), dtype=jnp.float32)
    target3 = jnp.zeros((M3,), dtype=jnp.int32)
    out3 = jax.block_until_ready(edge_density_loss(logits3, target3))
    ref3 = reference(logits3, target3)
    assert jnp.allclose(out3, ref3, rtol=5e-5, atol=5e-5), (out3, ref3)

    print("KERNEL_OK")
</pallas_src>

<mosaic_0001>
module attributes {stable_mosaic.version = 11 : i64} {
  func.func @_edl_kernel(%arg0: i32, %arg1: i32, %arg2: memref<128x32xbf16, #tpu.memory_space<vmem>>, %arg3: memref<128x1xi32, #tpu.memory_space<vmem>>, %arg4: memref<1x1x128xf32, #tpu.memory_space<vmem>>, %arg5: memref<1x1x128xf32, #tpu.memory_space<vmem>>, %arg6: memref<1x1xf32, #tpu.memory_space<vmem>>, %arg7: memref<1x1xf32, #tpu.memory_space<vmem>>) attributes {dimension_semantics = [#tpu.dimension_semantics<parallel>, #tpu.dimension_semantics<arbitrary>], iteration_bounds = array<i64: 2, 2>, scalar_prefetch = 0 : i64, scratch_operands = 2 : i64, tpu.core_type = #tpu.core_type<tc>, window_params = [{transform_indices = @transform_0, window_bounds = array<i64: 128, 32>}, {transform_indices = @transform_1, window_bounds = array<i64: 128, 1>}, {transform_indices = @transform_2, window_bounds = array<i64: 1, 1, 128>}, {transform_indices = @transform_3, window_bounds = array<i64: 1, 1, 128>}]} {
    %c0_i32 = arith.constant 0 : i32
    %0 = arith.cmpi eq, %arg1, %c0_i32 : i32
    %1 = arith.extui %0 : i1 to i32
    %c0_i32_0 = arith.constant 0 : i32
    %2 = arith.cmpi ne, %1, %c0_i32_0 : i32
    scf.if %2 {
      %cst_22 = arith.constant 0.000000e+00 : f32
      %52 = vector.broadcast %cst_22 : f32 to vector<1x1xf32>
      %c0_23 = arith.constant 0 : index
      %c0_24 = arith.constant 0 : index
      %53 = vector.load %arg6[%c0_23, %c0_24] : memref<1x1xf32, #tpu.memory_space<vmem>>, vector<1x1xf32>
      tpu.vector_store %arg6[%c0_23, %c0_24], %52 {strides = array<i32>} : memref<1x1xf32, #tpu.memory_space<vmem>>, vector<1x1xf32>,
      %cst_25 = arith.constant 0.000000e+00 : f32
      %54 = vector.broadcast %cst_25 : f32 to vector<1x1xf32>
      %c0_26 = arith.constant 0 : index
      %c0_27 = arith.constant 0 : index
      %55 = vector.load %arg7[%c0_26, %c0_27] : memref<1x1xf32, #tpu.memory_space<vmem>>, vector<1x1xf32>
      tpu.vector_store %arg7[%c0_26, %c0_27], %54 {strides = array<i32>} : memref<1x1xf32, #tpu.memory_space<vmem>>, vector<1x1xf32>,
    } else {
    }
    %c2_i32 = arith.constant 2 : i32
    %3 = arith.muli %arg0, %c2_i32 : i32
    %4 = arith.addi %3, %arg1 : i32
    %5 = tpu.iota {dimensions = array<i32: 0>} : vector<128x1xi32>
    %c128_i32 = arith.constant 128 : i32
    %6 = arith.muli %4, %c128_i32 : i32
    %7 = vector.broadcast %6 : i32 to vector<128x1xi32>
    %8 = arith.addi %5, %7 : vector<128x1xi32>
    %c300_i32 = arith.constant 300 : i32
    %9 = vector.broadcast %c300_i32 : i32 to vector<128x1xi32>
    %10 = arith.cmpi slt, %8, %9 : vector<128x1xi32>
    %c0 = arith.constant 0 : index
    %c0_1 = arith.constant 0 : index
    %11 = vector.load %arg2[%c0, %c0_1] : memref<128x32xbf16, #tpu.memory_space<vmem>>, vector<128x32xbf16>
    %12 = arith.extf %11 : vector<128x32xbf16> to vector<128x32xf32>
    %c0_2 = arith.constant 0 : index
    %c0_3 = arith.constant 0 : index
    %13 = vector.load %arg3[%c0_2, %c0_3] : memref<128x1xi32, #tpu.memory_space<vmem>>, vector<128x1xi32>
    %cst = arith.constant dense<0xFF800000> : vector<128xf32>
    %14 = vector.multi_reduction <maximumf>, %12, %cst [1] : vector<128x32xf32> to vector<128xf32>
    %15 = vector.shape_cast %14 : vector<128xf32> to vector<128x1xf32>
    %16 = vector.broadcast %15 : vector<128x1xf32> to vector<128x32xf32>
    %17 = arith.subf %12, %16 : vector<128x32xf32>
    %18 = math.exp %17 : vector<128x32xf32>
    %cst_4 = arith.constant dense<0.000000e+00> : vector<128xf32>
    %19 = vector.multi_reduction <add>, %18, %cst_4 [1] : vector<128x32xf32> to vector<128xf32>
    %20 = vector.shape_cast %19 : vector<128xf32> to vector<128x1xf32>
    %21 = tpu.iota {dimensions = array<i32: 1>} : vector<1x32xi32>
    %22 = vector.broadcast %21 : vector<1x32xi32> to vector<128x32xi32>
    %23 = vector.broadcast %13 : vector<128x1xi32> to vector<128x32xi32>
    %24 = arith.cmpi eq, %22, %23 : vector<128x32xi32>
    %cst_5 = arith.constant 0.000000e+00 : f32
    %25 = vector.broadcast %cst_5 : f32 to vector<128x32xf32>
    %26 = arith.select %24, %17, %25 : vector<128x32xi1>, vector<128x32xf32>
    %cst_6 = arith.constant dense<0.000000e+00> : vector<128xf32>
    %27 = vector.multi_reduction <add>, %26, %cst_6 [1] : vector<128x32xf32> to vector<128xf32>
    %28 = vector.shape_cast %27 : vector<128xf32> to vector<128x1xf32>
    %29 = math.log %20 : vector<128x1xf32>
    %30 = arith.subf %29, %28 : vector<128x1xf32>
    %cst_7 = arith.constant 0.000000e+00 : f32
    %31 = vector.broadcast %cst_7 : f32 to vector<128x1xf32>
    %32 = arith.select %10, %30, %31 : vector<128x1xi1>, vector<128x1xf32>
    %c0_i32_8 = arith.constant 0 : i32
    %33 = vector.broadcast %c0_i32_8 : i32 to vector<128x1xi32>
    %34 = arith.cmpi sgt, %13, %33 : vector<128x1xi32>
    %35 = arith.andi %10, %34 : vector<128x1xi1>
    %cst_9 = arith.constant 1.000000e+00 : f32
    %cst_10 = arith.constant 0.000000e+00 : f32
    %36 = vector.broadcast %cst_9 : f32 to vector<128x1xf32>
    %37 = vector.broadcast %cst_10 : f32 to vector<128x1xf32>
    %38 = arith.select %35, %36, %37 : vector<128x1xi1>, vector<128x1xf32>
    %c0_11 = arith.constant 0 : index
    %c0_12 = arith.constant 0 : index
    %39 = vector.load %arg6[%c0_11, %c0_12] : memref<1x1xf32, #tpu.memory_space<vmem>>, vector<1x1xf32>
    %cst_13 = arith.constant dense<0.000000e+00> : vector<1xf32>
    %40 = vector.multi_reduction <add>, %32, %cst_13 [0] : vector<128x1xf32> to vector<1xf32>
    %41 = vector.shape_cast %40 : vector<1xf32> to vector<1x1xf32>
    %42 = arith.addf %39, %41 : vector<1x1xf32>
    %c0_14 = arith.constant 0 : index
    %c0_15 = arith.constant 0 : index
    %43 = vector.load %arg6[%c0_14, %c0_15] : memref<1x1xf32, #tpu.memory_space<vmem>>, vector<1x1xf32>
    tpu.vector_store %arg6[%c0_14, %c0_15], %42 {strides = array<i32>} : memref<1x1xf32, #tpu.memory_space<vmem>>, vector<1x1xf32>,
    %c0_16 = arith.constant 0 : index
    %c0_17 = arith.constant 0 : index
    %44 = vector.load %arg7[%c0_16, %c0_17] : memref<1x1xf32, #tpu.memory_space<vmem>>, vector<1x1xf32>
    %cst_18 = arith.constant dense<0.000000e+00> : vector<1xf32>
    %45 = vector.multi_reduction <add>, %38, %cst_18 [0] : vector<128x1xf32> to vector<1xf32>
    %46 = vector.shape_cast %45 : vector<1xf32> to vector<1x1xf32>
    %47 = arith.addf %44, %46 : vector<1x1xf32>
    %c0_19 = arith.constant 0 : index
    %c0_20 = arith.constant 0 : index
    %48 = vector.load %arg7[%c0_19, %c0_20] : memref<1x1xf32, #tpu.memory_space<vmem>>, vector<1x1xf32>
    tpu.vector_store %arg7[%c0_19, %c0_20], %47 {strides = array<i32>} : memref<1x1xf32, #tpu.memory_space<vmem>>, vector<1x1xf32>,
    %c1_i32 = arith.constant 1 : i32
    %49 = arith.cmpi eq, %arg1, %c1_i32 : i32
    %50 = arith.extui %49 : i1 to i32
    %c0_i32_21 = arith.constant 0 : i32
    %51 = arith.cmpi ne, %50, %c0_i32_21 : i32
    scf.if %51 {
      %c0_22 = arith.constant 0 : index
      %c0_23 = arith.constant 0 : index
      %52 = vector.load %arg6[%c0_22, %c0_23] : memref<1x1xf32, #tpu.memory_space<vmem>>, vector<1x1xf32>
      %53 = vector.shape_cast %52 : vector<1x1xf32> to vector<1x1xf32>
      %54 = vector.broadcast %53 : vector<1x1xf32> to vector<1x128xf32>
      %c0_24 = arith.constant 0 : index
      %c0_25 = arith.constant 0 : index
      %c0_26 = arith.constant 0 : index
      %55 = vector.load %arg4[%c0_24, %c0_25, %c0_26] : memref<1x1x128xf32, #tpu.memory_space<vmem>>, vector<1x1x128xf32>
      %56 = vector.shape_cast %55 : vector<1x1x128xf32> to vector<1x128xf32>
      %57 = vector.shape_cast %54 : vector<1x128xf32> to vector<1x1x128xf32>
      tpu.vector_store %arg4[%c0_24, %c0_25, %c0_26], %57 {strides = array<i32>} : memref<1x1x128xf32, #tpu.memory_space<vmem>>, vector<1x1x128xf32>,
      %c0_27 = arith.constant 0 : index
      %c0_28 = arith.constant 0 : index
      %58 = vector.load %arg7[%c0_27, %c0_28] : memref<1x1xf32, #tpu.memory_space<vmem>>, vector<1x1xf32>
      %59 = vector.shape_cast %58 : vector<1x1xf32> to vector<1x1xf32>
      %60 = vector.broadcast %59 : vector<1x1xf32> to vector<1x128xf32>
      %c0_29 = arith.constant 0 : index
      %c0_30 = arith.constant 0 : index
      %c0_31 = arith.constant 0 : index
      %61 = vector.load %arg5[%c0_29, %c0_30, %c0_31] : memref<1x1x128xf32, #tpu.memory_space<vmem>>, vector<1x1x128xf32>
      %62 = vector.shape_cast %61 : vector<1x1x128xf32> to vector<1x128xf32>
      %63 = vector.shape_cast %60 : vector<1x128xf32> to vector<1x1x128xf32>
      tpu.vector_store %arg5[%c0_29, %c0_30, %c0_31], %63 {strides = array<i32>} : memref<1x1x128xf32, #tpu.memory_space<vmem>>, vector<1x1x128xf32>,
    } else {
    }
    return
  }
  func.func @transform_0(%arg0: i32, %arg1: i32) -> (i32, i32) {
    %c2_i32 = arith.constant 2 : i32
    %0 = arith.muli %arg0, %c2_i32 : i32
    %1 = arith.addi %0, %arg1 : i32
    %c2_i32_0 = arith.constant 2 : i32
    %2 = arith.minsi %1, %c2_i32_0 : i32
    %c0_i32 = arith.constant 0 : i32
    %c0_i32_1 = arith.constant 0 : i32
    return %2, %c0_i32 : i32, i32
  }
  func.func @transform_1(%arg0: i32, %arg1: i32) -> (i32, i32) {
    %c2_i32 = arith.constant 2 : i32
    %0 = arith.muli %arg0, %c2_i32 : i32
    %1 = arith.addi %0, %arg1 : i32
    %c2_i32_0 = arith.constant 2 : i32
    %2 = arith.minsi %1, %c2_i32_0 : i32
    %c0_i32 = arith.constant 0 : i32
    %c0_i32_1 = arith.constant 0 : i32
    return %2, %c0_i32 : i32, i32
  }
  func.func @transform_2(%arg0: i32, %arg1: i32) -> (i32, i32, i32) {
    %c0_i32 = arith.constant 0 : i32
    %c0_i32_0 = arith.constant 0 : i32
    %c0_i32_1 = arith.constant 0 : i32
    return %arg0, %c0_i32, %c0_i32_0 : i32, i32, i32
  }
  func.func @transform_3(%arg0: i32, %arg1: i32) -> (i32, i32, i32) {
    %c0_i32 = arith.constant 0 : i32
    %c0_i32_0 = arith.constant 0 : i32
    %c0_i32_1 = arith.constant 0 : i32
    return %arg0, %c0_i32, %c0_i32_0 : i32, i32, i32
  }
}

</mosaic_0001>

<llo_original>
// kernel: tpu_custom_call.1
$region0: #{tpu_custom_call.1}
  #allocation0 [shape = 'u32[]', space=smem, size = 0x4, offset = 0x4, fixed_abs, tag = 'smem constant byte address 0x4 - core index']
  #allocation1 [shape = 'u32[144,128]{1,0:T(1,128)}', space=vmem, size = 0x12000, scoped, tag = 'internal scratch']
  #allocation2 [shape = 'f32[1,1]{1,0:T(1,128)}', space=vmem, size = 0x200, scoped, tag = 'scratch operand']
  #allocation3 [shape = 'f32[1,1]{1,0:T(1,128)}', space=vmem, size = 0x200, scoped, tag = 'scratch operand']
  %s0 = inlined_call_operand.vmem [shape: bf16[300,32], index: 0, kind: input, shape index: {}]
  %s1 = inlined_call_operand.vmem [shape: s32[300,1], index: 1, kind: input, shape index: {}]
  %s2 = inlined_call_operand.hbm [shape: f32[2,1,128], index: 2, kind: output, shape index: {0}]
  %s3 = inlined_call_operand.hbm [shape: f32[2,1,128], index: 3, kind: output, shape index: {1}]
  %4 = xla_tuple %s2, %s3
  %s5 = sld [smem:[#allocation0]]
  $region57: #{tpu_custom_call.1} parent=0
    _
  %s7 = ssub.s32 1, %s5
  %s8 = scalar_select 0, %s7, %s5
  $region1: #{tpu_custom_call.1} parent=0
    #allocation4 [shape = 'u8[1024]{0}', space=vmem, size = 0x400, scoped, tag = 'output window, operand 0']
    #allocation5 [shape = 's32[2]{0}', space=sflag, size = 0x8, scoped, tag = 'scoped memory for tpu_custom_call.1']
    #allocation6 [shape = 'u8[1024]{0}', space=vmem, size = 0x400, scoped, tag = 'output window, operand 1']
    #allocation7 [shape = 's32[2]{0}', space=sflag, size = 0x8, scoped, tag = 'scoped memory for tpu_custom_call.1']
    %9 = vsyncpa [#allocation5], 0
    %s10 = scalar_lea.sflag [#allocation5], 1
    %11 = vsyncpa %s10, 0
    %12 = vsyncpa [#allocation7], 0
    %s13 = scalar_lea.sflag [#allocation7], 1
    %14 = vsyncpa %s13, 0
    loop: start=0, step=1, limit=6
    $region2: #{tpu_custom_call.1} parent=1 // loop_pre_header
      _
    $region3: #{tpu_custom_call.1} parent=1 // loop_header
      %s16 = sphi 0, %s20
      %p17 = scmp.ge.s32.totalorder %s16, 6
      %s23 = sphi 0, %s35
      %s24 = sphi 0, %s31
      %s25 = sphi 0, %s23
      %s26 = sphi 0, %s24
      %s27 = sphi 0, %s25
      %s28 = sphi 0, %s26
      %s46 = sphi 0, %s48
      %s49 = sphi 0, %s46
      %s50 = sphi 0, %s49
      %s66 = sphi 0, %s50
      %s80 = sphi 0, %s82
      %s83 = sphi 0, %s80
      %s84 = sphi 0, %s83
      %s100 = sphi 0, %s84
      %s106 = sphi 0, %s108
      %s109 = sphi 0, %s106
      %s110 = sphi 0, %s109
      %s126 = sphi 0, %s110
      %s132 = sphi 0, %s134
      %s135 = sphi 0, %s132
      %s136 = sphi 0, %s135
      %s152 = sphi 0, %s136
    $region4: #{tpu_custom_call.1} parent=1 // loop_header_branch
      %19 = sbr.rel (%p17) target = $region8
    $region5: #{tpu_custom_call.1} parent=1 // loop_body
      %s21 = ssub.s32 %s16, 1
      %s22 = ssub.s32 %s16, 2
      %s29 = sadd.s32 1, %s24
      %p30 = scmp.ge.s32.totalorder %s29, 2
      %s31 = scalar_select %p30, 0, %s29
      %s32 = sadd.s32 1, %s23
      %s33 = scalar_select %p30, %s32, %s23
      %p34 = scmp.ge.s32.totalorder %s33, 2
      %s35 = scalar_select %p34, 0, %s33
      %s36 = smul.u32 %s23, 2
      %s37 = sadd.s32 %s36, %s24
      %p38 = scmp.lt.s32.totalorder %s37, 2
      %s39 = scalar_select %p38, %s37, 2
      %s40 = smul.u32 %s35, 2
      %s41 = sadd.s32 %s40, %s31
      %p42 = scmp.lt.s32.totalorder %s41, 2
      %s43 = scalar_select %p42, %s41, 2
      %s44 = ssub.s32 %s39, %s43
      %p45 = scmp.eq.s32.totalorder %s44, 0
      %s47 = sadd.s32 %s46, 1
      %s48 = scalar_select %p45, %s46, %s47
      %p51 = pneg %p45
      %p52 = scmp.eq.s32.totalorder %s16, 3
      %p53 = por %p51, %p52
      %p54 = scmp.ne.s32.totalorder %s46, %s49
      %p55 = scmp.eq.s32.totalorder %s16, 0
      %p56 = por %p54, %p55
      %p57 = scmp.ne.s32.totalorder %s46, %s49
      %p58 = scmp.eq.s32.totalorder %s21, 3
      %p59 = por %p57, %p58
      %p60 = scmp.ne.s32.totalorder %s49, %s50
      %p61 = scmp.eq.s32.totalorder %s21, 0
      %p62 = por %p60, %p61
      %p63 = scmp.ne.s32.totalorder %s49, %s50
      %p64 = scmp.eq.s32.totalorder %s22, 3
      %p65 = por %p63, %p64
      %p67 = scmp.ne.s32.totalorder %s50, %s66
      %p68 = scmp.eq.s32.totalorder %s22, 0
      %p69 = por %p67, %p68
      %s70 = smul.u32 %s23, 2
      %s71 = sadd.s32 %s70, %s24
      %p72 = scmp.lt.s32.totalorder %s71, 2
      %s73 = scalar_select %p72, %s71, 2
      %s74 = smul.u32 %s35, 2
      %s75 = sadd.s32 %s74, %s31
      %p76 = scmp.lt.s32.totalorder %s75, 2
      %s77 = scalar_select %p76, %s75, 2
      %s78 = ssub.s32 %s73, %s77
      %p79 = scmp.eq.s32.totalorder %s78, 0
      %s81 = sadd.s32 %s80, 1
      %s82 = scalar_select %p79, %s80, %s81
      %p85 = pneg %p79
      %p86 = scmp.eq.s32.totalorder %s16, 3
      %p87 = por %p85, %p86
      %p88 = scmp.ne.s32.totalorder %s80, %s83
      %p89 = scmp.eq.s32.totalorder %s16, 0
      %p90 = por %p88, %p89
      %p91 = scmp.ne.s32.totalorder %s80, %s83
      %p92 = scmp.eq.s32.totalorder %s21, 3
      %p93 = por %p91, %p92
      %p94 = scmp.ne.s32.totalorder %s83, %s84
      %p95 = scmp.eq.s32.totalorder %s21, 0
      %p96 = por %p94, %p95
      %p97 = scmp.ne.s32.totalorder %s83, %s84
      %p98 = scmp.eq.s32.totalorder %s22, 3
      %p99 = por %p97, %p98
      %p101 = scmp.ne.s32.totalorder %s84, %s100
      %p102 = scmp.eq.s32.totalorder %s22, 0
      %p103 = por %p101, %p102
      %s104 = ssub.s32 %s23, %s35
      %p105 = scmp.eq.s32.totalorder %s104, 0
      %s107 = sadd.s32 %s106, 1
      %s108 = scalar_select %p105, %s106, %s107
      %p111 = pneg %p105
      %p112 = scmp.eq.s32.totalorder %s16, 3
      %p113 = por %p111, %p112
      %p114 = scmp.ne.s32.totalorder %s106, %s109
      %p115 = scmp.eq.s32.totalorder %s16, 0
      %p116 = por %p114, %p115
      %p117 = scmp.ne.s32.totalorder %s106, %s109
      %p118 = scmp.eq.s32.totalorder %s21, 3
      %p119 = por %p117, %p118
      %p120 = scmp.ne.s32.totalorder %s109, %s110
      %p121 = scmp.eq.s32.totalorder %s21, 0
      %p122 = por %p120, %p121
      %p123 = scmp.ne.s32.totalorder %s109, %s110
      %p124 = scmp.eq.s32.totalorder %s22, 3
      %p125 = por %p123, %p124
      %p127 = scmp.ne.s32.totalorder %s110, %s126
      %p128 = scmp.eq.s32.totalorder %s22, 0
      %p129 = por %p127, %p128
      %s130 = ssub.s32 %s23, %s35
      %p131 = scmp.eq.s32.totalorder %s130, 0
      %s133 = sadd.s32 %s132, 1
      %s134 = scalar_select %p131, %s132, %s133
      %p137 = pneg %p131
      %p138 = scmp.eq.s32.totalorder %s16, 3
      %p139 = por %p137, %p138
      %p140 = scmp.ne.s32.totalorder %s132, %s135
      %p141 = scmp.eq.s32.totalorder %s16, 0
      %p142 = por %p140, %p141
      %p143 = scmp.ne.s32.totalorder %s132, %s135
      %p144 = scmp.eq.s32.totalorder %s21, 3
      %p145 = por %p143, %p144
      %p146 = scmp.ne.s32.totalorder %s135, %s136
      %p147 = scmp.eq.s32.totalorder %s21, 0
      %p148 = por %p146, %p147
      %p149 = scmp.ne.s32.totalorder %s135, %s136
      %p150 = scmp.eq.s32.totalorder %s22, 3
      %p151 = por %p149, %p150
      %p153 = scmp.ne.s32.totalorder %s136, %s152
      %p154 = scmp.eq.s32.totalorder %s22, 0
      %p155 = por %p153, %p154
      %p156 = scmp.le.s32.totalorder 1, %s16
      %p157 = scmp.lt.s32.totalorder %s16, 5
      %p158 = pnand %p156, %p157
      %p159 = pneg %p158
      // Predicated region
      $region9: #{tpu_custom_call.1} parent=5 // pred_check
        _
      $region10: #{tpu_custom_call.1} parent=5 // pred_check_branch
        %161 = sbr.rel (%p158) target = $region12
      $region11: #{tpu_custom_call.1} parent=5 // pred_region
        %s162 = ssub.s32 %s16, 1
      $region12: #{tpu_custom_call.1} parent=5 // pred_fallthru
        _
      %p163 = scmp.lt.s32.totalorder %s16, 4
      // Predicated region
      $region13: #{tpu_custom_call.1} parent=5 // pred_check
        %p164 = pneg %p163
      $region14: #{tpu_custom_call.1} parent=5 // pred_check_branch
        %166 = sbr.rel (%p164) target = $region16
      $region15: #{tpu_custom_call.1} parent=5 // pred_region
        // Predicated region
        $region17: #{tpu_custom_call.1} parent=15 // pred_check
          %p167 = pneg %p56
        $region18: #{tpu_custom_call.1} parent=15 // pred_check_branch
          %169 = sbr.rel (%p167) target = $region20
        $region19: #{tpu_custom_call.1} parent=15 // pred_region
          %s170 = smul.u32 %s23, 2
          %s171 = sadd.s32 %s170, %s24
          %p172 = scmp.lt.s32.totalorder %s171, 2
          %s173 = scalar_select %p172, %s171, 2
          %s174 = smul.u32 16, %s173
          %s175 = ssub.s32 38, %s174
          %p176 = scmp.lt.s32.totalorder %s175, 16
          %s177 = scalar_select %p176, %s175, 16
          %s178 = smul.u32 64, %s177
          %p179 = scmp.lt.s32.totalorder %s174, 37
          %s180 = scalar_select %p179, %s174, 37
          %s181 = smul.addr %s180, 4
          %s182 = scalar_lea.vmem %s0, %s181
          %s183 = smul.u32 %s23, 2
          %s184 = sadd.s32 %s183, %s24
          %p185 = scmp.lt.s32.totalorder %s184, 2
          %s186 = scalar_select %p185, %s184, 2
          %s187 = smul.u32 16, %s186
          %s188 = ssub.s32 38, %s187
          %p189 = scmp.lt.s32.totalorder %s188, 16
          %s190 = scalar_select %p189, %s188, 16
          %s191 = smul.u32 64, %s190
        $region20: #{tpu_custom_call.1} parent=15 // pred_fallthru
          _
        // Predicated region
        $region21: #{tpu_custom_call.1} parent=15 // pred_check
          %p192 = pneg %p90
        $region22: #{tpu_custom_call.1} parent=15 // pred_check_branch
          %194 = sbr.rel (%p192) target = $region24
        $region23: #{tpu_custom_call.1} parent=15 // pred_region
          %s195 = smul.u32 %s23, 2
          %s196 = sadd.s32 %s195, %s24
          %p197 = scmp.lt.s32.totalorder %s196, 2
          %s198 = scalar_select %p197, %s196, 2
          %s199 = smul.u32 16, %s198
          %s200 = ssub.s32 38, %s199
          %p201 = scmp.lt.s32.totalorder %s200, 16
          %s202 = scalar_select %p201, %s200, 16
          %s203 = smul.u32 128, %s202
          %p204 = scmp.lt.s32.totalorder %s199, 37
          %s205 = scalar_select %p204, %s199, 37
          %s206 = smul.addr %s205, 8
          %s207 = scalar_lea.vmem %s1, %s206
          %s208 = smul.u32 %s23, 2
          %s209 = sadd.s32 %s208, %s24
          %p210 = scmp.lt.s32.totalorder %s209, 2
          %s211 = scalar_select %p210, %s209, 2
          %s212 = smul.u32 16, %s211
          %s213 = ssub.s32 38, %s212
          %p214 = scmp.lt.s32.totalorder %s213, 16
          %s215 = scalar_select %p214, %s213, 16
          %s216 = smul.u32 128, %s215
        $region24: #{tpu_custom_call.1} parent=15 // pred_fallthru
          _
      $region16: #{tpu_custom_call.1} parent=5 // pred_fallthru
        _
      %p217 = scmp.le.s32.totalorder 1, %s16
      %p218 = scmp.lt.s32.totalorder %s16, 5
      %p219 = pnand %p217, %p218
      %p220 = pneg %p219
      // Predicated region
      $region25: #{tpu_custom_call.1} parent=5 // pred_check
        _
      $region26: #{tpu_custom_call.1} parent=5 // pred_check_branch
        %222 = sbr.rel (%p219) target = $region28
      $region27: #{tpu_custom_call.1} parent=5 // pred_region
        %s223 = ssub.s32 %s16, 1
        %s224 = smul.u32 %s25, 2
        %s225 = sadd.s32 %s224, %s26
        %p226 = scmp.lt.s32.totalorder %s225, 2
        %s227 = scalar_select %p226, %s225, 2
        %s228 = smul.u32 16, %s227
        %s229 = ssub.s32 38, %s228
        %p230 = scmp.lt.s32.totalorder %s229, 16
        %s231 = scalar_select %p230, %s229, 16
        %s232 = smul.u32 64, %s231
        %p233 = scmp.lt.s32.totalorder %s228, 37
        %s234 = scalar_select %p233, %s228, 37
        %s235 = smul.addr %s234, 4
        %s236 = scalar_lea.vmem %s0, %s235
        %p237 = pneg %p62
        %p238 = pneg %p59
        %s239 = smul.u32 %s25, 2
        %s240 = sadd.s32 %s239, %s26
        %p241 = scmp.lt.s32.totalorder %s240, 2
        %s242 = scalar_select %p241, %s240, 2
        %s243 = smul.u32 16, %s242
        %s244 = ssub.s32 38, %s243
        %p245 = scmp.lt.s32.totalorder %s244, 16
        %s246 = scalar_select %p245, %s244, 16
        %s247 = smul.u32 128, %s246
        %p248 = scmp.lt.s32.totalorder %s243, 37
        %s249 = scalar_select %p248, %s243, 37
        %s250 = smul.addr %s249, 8
        %s251 = scalar_lea.vmem %s1, %s250
        %p252 = pneg %p96
        %p253 = pneg %p93
        %p254 = pneg %p122
        %p255 = pneg %p119
        %s256 = sand.u32 %s109, 1
        %s257 = scalar_lea.sflag [#allocation5], %s256
        %s258 = sand.u32 %s109, 1
        %s259 = scalar_lea.vmem [#allocation4], %s258
        %p260 = pneg %p148
        %p261 = pneg %p145
        %s262 = sand.u32 %s135, 1
        %s263 = scalar_lea.sflag [#allocation7], %s262
        %s264 = sand.u32 %s135, 1
        %s265 = scalar_lea.vmem [#allocation6], %s264
        %s266 = smul.u32 %s25, 2
        %s267 = sadd.s32 %s266, %s26
        %p268 = scmp.lt.s32.totalorder %s267, 2
        %s269 = scalar_select %p268, %s267, 2
        %s270 = smul.u32 16, %s269
        %s271 = ssub.s32 38, %s270
        %p272 = scmp.lt.s32.totalorder %s271, 16
        %s273 = scalar_select %p272, %s271, 16
        %s274 = smul.u32 64, %s273
        %p275 = scmp.lt.s32.totalorder %s270, 37
        %s276 = scalar_select %p275, %s270, 37
        %s277 = smul.addr %s276, 4
        %s278 = scalar_lea.vmem %s0, %s277
        %s279 = smul.u32 %s25, 2
        %s280 = sadd.s32 %s279, %s26
        %p281 = scmp.lt.s32.totalorder %s280, 2
        %s282 = scalar_select %p281, %s280, 2
        %s283 = smul.u32 16, %s282
        %s284 = ssub.s32 38, %s283
        %p285 = scmp.lt.s32.totalorder %s284, 16
        %s286 = scalar_select %p285, %s284, 16
        %s287 = smul.u32 64, %s286
        %s288 = smul.u32 %s25, 2
        %s289 = sadd.s32 %s288, %s26
        %p290 = scmp.lt.s32.totalorder %s289, 2
        %s291 = scalar_select %p290, %s289, 2
        %s292 = smul.u32 16, %s291
        %s293 = ssub.s32 38, %s292
        %p294 = scmp.lt.s32.totalorder %s293, 16
        %s295 = scalar_select %p294, %s293, 16
        %s296 = smul.u32 128, %s295
        %p297 = scmp.lt.s32.totalorder %s292, 37
        %s298 = scalar_select %p297, %s292, 37
        %s299 = smul.addr %s298, 8
        %s300 = scalar_lea.vmem %s1, %s299
        %s301 = smul.u32 %s25, 2
        %s302 = sadd.s32 %s301, %s26
        %p303 = scmp.lt.s32.totalorder %s302, 2
        %s304 = scalar_select %p303, %s302, 2
        %s305 = smul.u32 16, %s304
        %s306 = ssub.s32 38, %s305
        %p307 = scmp.lt.s32.totalorder %s306, 16
        %s308 = scalar_select %p307, %s306, 16
        %s309 = smul.u32 128, %s308
        %p310 = scmp.eq.s32.totalorder %s26, 0
        // Predicated region
        $region29: #{tpu_custom_call.1} parent=27 // pred_check
          %p311 = pneg %p310
        $region30: #{tpu_custom_call.1} parent=27 // pred_check_branch
          %313 = sbr.rel (%p311) target = $region32
        $region31: #{tpu_custom_call.1} parent=27 // pred_region
          %vm314 = vcmask 0
          %315 = vst.msk [vmem:[#allocation2] sm:$0x1] %vm314, 0.0
          %316 = vst.msk [vmem:[#allocation3] sm:$0x1] %vm314, 0.0
        $region32: #{tpu_custom_call.1} parent=27 // pred_fallthru
          _
        %s317 = smul.u32 %s25, 2
        %s318 = sadd.s32 %s317, %s26
        %v319 = vlaneseq
        %v320 = vshrl.u32 %v319, 7
        %v321 = vadd.s32 %v320, 8
        %v322 = vadd.s32 %v320, 16
        %v323 = vadd.s32 %v320, 24
        %v324 = vadd.s32 %v320, 32
        %v325 = vadd.s32 %v320, 40
        %v326 = vadd.s32 %v320, 48
        %v327 = vadd.s32 %v320, 56
        %v328 = vadd.s32 %v320, 64
        %v329 = vadd.s32 %v320, 72
        %v330 = vadd.s32 %v320, 80
        %v331 = vadd.s32 %v320, 88
        %v332 = vadd.s32 %v320, 96
        %v333 = vadd.s32 %v320, 104
        %v334 = vadd.s32 %v320, 112
        %v335 = vadd.s32 %v320, 120
        %s336 = smul.u32 %s318, 128
        %v337 = vstv %s336
        %v338 = vadd.s32 %v320, %v337
        %v339 = vadd.s32 %v321, %v337
        %v340 = vadd.s32 %v322, %v337
        %v341 = vadd.s32 %v323, %v337
        %v342 = vadd.s32 %v324, %v337
        %v343 = vadd.s32 %v325, %v337
        %v344 = vadd.s32 %v326, %v337
        %v345 = vadd.s32 %v327, %v337
        %v346 = vadd.s32 %v328, %v337
        %v347 = vadd.s32 %v329, %v337
        %v348 = vadd.s32 %v330, %v337
        %v349 = vadd.s32 %v331, %v337
        %v350 = vadd.s32 %v332, %v337
        %v351 = vadd.s32 %v333, %v337
        %v352 = vadd.s32 %v334, %v337
        %v353 = vadd.s32 %v335, %v337
        %vm354 = vcmp.lt.s32.totalorder %v338, 300
        %vm355 = vcmp.lt.s32.totalorder %v339, 300
        %vm356 = vcmp.lt.s32.totalorder %v340, 300
        %vm357 = vcmp.lt.s32.totalorder %v341, 300
        %vm358 = vcmp.lt.s32.totalorder %v342, 300
        %vm359 = vcmp.lt.s32.totalorder %v343, 300
        %vm360 = vcmp.lt.s32.totalorder %v344, 300
        %vm361 = vcmp.lt.s32.totalorder %v345, 300
        %vm362 = vcmp.lt.s32.totalorder %v346, 300
        %vm363 = vcmp.lt.s32.totalorder %v347, 300
        %vm364 = vcmp.lt.s32.totalorder %v348, 300
        %vm365 = vcmp.lt.s32.totalorder %v349, 300
        %vm366 = vcmp.lt.s32.totalorder %v350, 300
        %vm367 = vcmp.lt.s32.totalorder %v351, 300
        %vm368 = vcmp.lt.s32.totalorder %v352, 300
        %vm369 = vcmp.lt.s32.totalorder %v353, 300
        %v370 = vld [vmem:[%s278] sm:$0xf]
        %v371 = vld [vmem:[%s278 + $0x4] sm:$0xf]
        %v372 = vld [vmem:[%s278 + $0x8] sm:$0xf]
        %v373 = vld [vmem:[%s278 + $0xc] sm:$0xf]
        %v374 = vld [vmem:[%s278 + $0x10] sm:$0xf]
        %v375 = vld [vmem:[%s278 + $0x14] sm:$0xf]
        %v376 = vld [vmem:[%s278 + $0x18] sm:$0xf]
        %v377 = vld [vmem:[%s278 + $0x1c] sm:$0xf]
        %v378 = vld [vmem:[%s278 + $0x20] sm:$0xf]
        %v379 = vld [vmem:[%s278 + $0x24] sm:$0xf]
        %v380 = vld [vmem:[%s278 + $0x28] sm:$0xf]
        %v381 = vld [vmem:[%s278 + $0x2c] sm:$0xf]
        %v382 = vld [vmem:[%s278 + $0x30] sm:$0xf]
        %v383 = vld [vmem:[%s278 + $0x34] sm:$0xf]
        %v384 = vld [vmem:[%s278 + $0x38] sm:$0xf]
        %v385 = vld [vmem:[%s278 + $0x3c] sm:$0xf]
        %v386 = vunpack.c.l.bf16 %v370
        %v387 = vunpack.c.l.bf16 %v371
        %v388 = vunpack.c.l.bf16 %v372
        %v389 = vunpack.c.l.bf16 %v373
        %v390 = vunpack.c.l.bf16 %v374
        %v391 = vunpack.c.l.bf16 %v375
        %v392 = vunpack.c.l.bf16 %v376
        %v393 = vunpack.c.l.bf16 %v377
        %v394 = vunpack.c.l.bf16 %v378
        %v395 = vunpack.c.l.bf16 %v379
        %v396 = vunpack.c.l.bf16 %v380
        %v397 = vunpack.c.l.bf16 %v381
        %v398 = vunpack.c.l.bf16 %v382
        %v399 = vunpack.c.l.bf16 %v383
        %v400 = vunpack.c.l.bf16 %v384
        %v401 = vunpack.c.l.bf16 %v385
        %v402 = vld [vmem:[%s300] sm:$0xff]
        %v403 = vld [vmem:[%s300 + $0x8] sm:$0xff]
        %v404 = vld [vmem:[%s300 + $0x10] sm:$0xff]
        %v405 = vld [vmem:[%s300 + $0x18] sm:$0xff]
        %v406 = vld [vmem:[%s300 + $0x20] sm:$0xff]
        %v407 = vld [vmem:[%s300 + $0x28] sm:$0xff]
        %v408 = vld [vmem:[%s300 + $0x30] sm:$0xff]
        %v409 = vld [vmem:[%s300 + $0x38] sm:$0xff]
        %v410 = vld [vmem:[%s300 + $0x40] sm:$0xff]
        %v411 = vld [vmem:[%s300 + $0x48] sm:$0xff]
        %v412 = vld [vmem:[%s300 + $0x50] sm:$0xff]
        %v413 = vld [vmem:[%s300 + $0x58] sm:$0xff]
        %v414 = vld [vmem:[%s300 + $0x60] sm:$0xff]
        %v415 = vld [vmem:[%s300 + $0x68] sm:$0xff]
        %v416 = vld [vmem:[%s300 + $0x70] sm:$0xff]
        %v417 = vld [vmem:[%s300 + $0x78] sm:$0xff]
        %vm418 = vcmask 261120
        %v419 = vsel %vm418, %v386, -inf
        %420 = vmax.xlane.f32.xlu0 %v419
        %v421 = vpop.xlane.xlu0 %420
        %v422 = vsel %vm418, %v387, -inf
        %423 = vmax.xlane.f32.xlu0 %v422
        %v424 = vpop.xlane.xlu0 %423
        %v425 = vsel %vm418, %v388, -inf
        %426 = vmax.xlane.f32.xlu0 %v425
        %v427 = vpop.xlane.xlu0 %426
        %v428 = vsel %vm418, %v389, -inf
        %429 = vmax.xlane.f32.xlu0 %v428
        %v430 = vpop.xlane.xlu0 %429
        %v431 = vsel %vm418, %v390, -inf
        %432 = vmax.xlane.f32.xlu0 %v431
        %v433 = vpop.xlane.xlu0 %432
        %v434 = vsel %vm418, %v391, -inf
        %435 = vmax.xlane.f32.xlu0 %v434
        %v436 = vpop.xlane.xlu0 %435
        %v437 = vsel %vm418, %v392, -inf
        %438 = vmax.xlane.f32.xlu0 %v437
        %v439 = vpop.xlane.xlu0 %438
        %v440 = vsel %vm418, %v393, -inf
        %441 = vmax.xlane.f32.xlu0 %v440
        %v442 = vpop.xlane.xlu0 %441
        %v443 = vsel %vm418, %v394, -inf
        %444 = vmax.xlane.f32.xlu0 %v443
        %v445 = vpop.xlane.xlu0 %444
        %v446 = vsel %vm418, %v395, -inf
        %447 = vmax.xlane.f32.xlu0 %v446
        %v448 = vpop.xlane.xlu0 %447
        %v449 = vsel %vm418, %v396, -inf
        %450 = vmax.xlane.f32.xlu0 %v449
        %v451 = vpop.xlane.xlu0 %450
        %v452 = vsel %vm418, %v397, -inf
        %453 = vmax.xlane.f32.xlu0 %v452
        %v454 = vpop.xlane.xlu0 %453
        %v455 = vsel %vm418, %v398, -inf
        %456 = vmax.xlane.f32.xlu0 %v455
        %v457 = vpop.xlane.xlu0 %456
        %v458 = vsel %vm418, %v399, -inf
        %459 = vmax.xlane.f32.xlu0 %v458
        %v460 = vpop.xlane.xlu0 %459
        %v461 = vsel %vm418, %v400, -inf
        %462 = vmax.xlane.f32.xlu0 %v461
        %v463 = vpop.xlane.xlu0 %462
        %v464 = vsel %vm418, %v401, -inf
        %465 = vmax.xlane.f32.xlu0 %v464
        %v466 = vpop.xlane.xlu0 %465
        %v467 = vsub.f32 %v386, %v421
        %v468 = vsub.f32 %v387, %v424
        %v469 = vsub.f32 %v388, %v427
        %v470 = vsub.f32 %v389, %v430
        %v471 = vsub.f32 %v390, %v433
        %v472 = vsub.f32 %v391, %v436
        %v473 = vsub.f32 %v392, %v439
        %v474 = vsub.f32 %v393, %v442
        %v475 = vsub.f32 %v394, %v445
        %v476 = vsub.f32 %v395, %v448
        %v477 = vsub.f32 %v396, %v451
        %v478 = vsub.f32 %v397, %v454
        %v479 = vsub.f32 %v398, %v457
        %v480 = vsub.f32 %v399, %v460
        %v481 = vsub.f32 %v400, %v463
        %v482 = vsub.f32 %v401, %v466
        %v483 = vmul.f32 %v467, 1.442695
        %v484 = vpow.pop %v483
        %v485 = vmul.f32 %v468, 1.442695
        %v486 = vpow.pop %v485
        %v487 = vmul.f32 %v469, 1.442695
        %v488 = vpow.pop %v487
        %v489 = vmul.f32 %v470, 1.442695
        %v490 = vpow.pop %v489
        %v491 = vmul.f32 %v471, 1.442695
        %v492 = vpow.pop %v491
        %v493 = vmul.f32 %v472, 1.442695
        %v494 = vpow.pop %v493
        %v495 = vmul.f32 %v473, 1.442695
        %v496 = vpow.pop %v495
        %v497 = vmul.f32 %v474, 1.442695
        %v498 = vpow.pop %v497
        %v499 = vmul.f32 %v475, 1.442695
        %v500 = vpow.pop %v499
        %v501 = vmul.f32 %v476, 1.442695
        %v502 = vpow.pop %v501
        %v503 = vmul.f32 %v477, 1.442695
        %v504 = vpow.pop %v503
        %v505 = vmul.f32 %v478, 1.442695
        %v506 = vpow.pop %v505
        %v507 = vmul.f32 %v479, 1.442695
        %v508 = vpow.pop %v507
        %v509 = vmul.f32 %v480, 1.442695
        %v510 = vpow.pop %v509
        %v511 = vmul.f32 %v481, 1.442695
        %v512 = vpow.pop %v511
        %v513 = vmul.f32 %v482, 1.442695
        %v514 = vpow.pop %v513
        %v515 = vsel %vm418, %v484, 0.0
        %516 = vadd.xlane.f32.xlu0 %v515
        %v517 = vpop.xlane.xlu0 %516
        %v518 = vsel %vm418, %v486, 0.0
        %519 = vadd.xlane.f32.xlu0 %v518
        %v520 = vpop.xlane.xlu0 %519
        %v521 = vsel %vm418, %v488, 0.0
        %522 = vadd.xlane.f32.xlu0 %v521
        %v523 = vpop.xlane.xlu0 %522
        %v524 = vsel %vm418, %v490, 0.0
        %525 = vadd.xlane.f32.xlu0 %v524
        %v526 = vpop.xlane.xlu0 %525
        %v527 = vsel %vm418, %v492, 0.0
        %528 = vadd.xlane.f32.xlu0 %v527
        %v529 = vpop.xlane.xlu0 %528
        %v530 = vsel %vm418, %v494, 0.0
        %531 = vadd.xlane.f32.xlu0 %v530
        %v532 = vpop.xlane.xlu0 %531
        %v533 = vsel %vm418, %v496, 0.0
        %534 = vadd.xlane.f32.xlu0 %v533
        %v535 = vpop.xlane.xlu0 %534
        %v536 = vsel %vm418, %v498, 0.0
        %537 = vadd.xlane.f32.xlu0 %v536
        %v538 = vpop.xlane.xlu0 %537
        %v539 = vsel %vm418, %v500, 0.0
        %540 = vadd.xlane.f32.xlu0 %v539
        %v541 = vpop.xlane.xlu0 %540
        %v542 = vsel %vm418, %v502, 0.0
        %543 = vadd.xlane.f32.xlu0 %v542
        %v544 = vpop.xlane.xlu0 %543
        %v545 = vsel %vm418, %v504, 0.0
        %546 = vadd.xlane.f32.xlu0 %v545
        %v547 = vpop.xlane.xlu0 %546
        %v548 = vsel %vm418, %v506, 0.0
        %549 = vadd.xlane.f32.xlu0 %v548
        %v550 = vpop.xlane.xlu0 %549
        %v551 = vsel %vm418, %v508, 0.0
        %552 = vadd.xlane.f32.xlu0 %v551
        %v553 = vpop.xlane.xlu0 %552
        %v554 = vsel %vm418, %v510, 0.0
        %555 = vadd.xlane.f32.xlu0 %v554
        %v556 = vpop.xlane.xlu0 %555
        %v557 = vsel %vm418, %v512, 0.0
        %558 = vadd.xlane.f32.xlu0 %v557
        %v559 = vpop.xlane.xlu0 %558
        %v560 = vsel %vm418, %v514, 0.0
        %561 = vadd.xlane.f32.xlu0 %v560
        %v562 = vpop.xlane.xlu0 %561
        %v563 = vlaneseq
        %v564 = vand.u32 %v563, 127
        %565 = vset.pattern.permute.xlu0 0
        %566 = vperm.xlu0 %565, %v402
        %v567 = vpop.permute.xlu0 %566
        %568 = vset.pattern.permute.xlu0 0
        %569 = vperm.xlu0 %568, %v403
        %v570 = vpop.permute.xlu0 %569
        %571 = vset.pattern.permute.xlu0 0
        %572 = vperm.xlu0 %571, %v404
        %v573 = vpop.permute.xlu0 %572
        %574 = vset.pattern.permute.xlu0 0
        %575 = vperm.xlu0 %574, %v405
        %v576 = vpop.permute.xlu0 %575
        %577 = vset.pattern.permute.xlu0 0
        %578 = vperm.xlu0 %577, %v406
        %v579 = vpop.permute.xlu0 %578
        %580 = vset.pattern.permute.xlu0 0
        %581 = vperm.xlu0 %580, %v407
        %v582 = vpop.permute.xlu0 %581
        %583 = vset.pattern.permute.xlu0 0
        %584 = vperm.xlu0 %583, %v408
        %v585 = vpop.permute.xlu0 %584
        %586 = vset.pattern.permute.xlu0 0
        %587 = vperm.xlu0 %586, %v409
        %v588 = vpop.permute.xlu0 %587
        %589 = vset.pattern.permute.xlu0 0
        %590 = vperm.xlu0 %589, %v410
        %v591 = vpop.permute.xlu0 %590
        %592 = vset.pattern.permute.xlu0 0
        %593 = vperm.xlu0 %592, %v411
        %v594 = vpop.permute.xlu0 %593
        %595 = vset.pattern.permute.xlu0 0
        %596 = vperm.xlu0 %595, %v412
        %v597 = vpop.permute.xlu0 %596
        %598 = vset.pattern.permute.xlu0 0
        %599 = vperm.xlu0 %598, %v413
        %v600 = vpop.permute.xlu0 %599
        %601 = vset.pattern.permute.xlu0 0
        %602 = vperm.xlu0 %601, %v414
        %v603 = vpop.permute.xlu0 %602
        %604 = vset.pattern.permute.xlu0 0
        %605 = vperm.xlu0 %604, %v415
        %v606 = vpop.permute.xlu0 %605
        %607 = vset.pattern.permute.xlu0 0
        %608 = vperm.xlu0 %607, %v416
        %v609 = vpop.permute.xlu0 %608
        %610 = vset.pattern.permute.xlu0 0
        %611 = vperm.xlu0 %610, %v417
        %v612 = vpop.permute.xlu0 %611
        %vm613 = vcmp.eq.s32.totalorder %v564, %v567
        %vm614 = vcmp.eq.s32.totalorder %v564, %v570
        %vm615 = vcmp.eq.s32.totalorder %v564, %v573
        %vm616 = vcmp.eq.s32.totalorder %v564, %v576
        %vm617 = vcmp.eq.s32.totalorder %v564, %v579
        %vm618 = vcmp.eq.s32.totalorder %v564, %v582
        %vm619 = vcmp.eq.s32.totalorder %v564, %v585
        %vm620 = vcmp.eq.s32.totalorder %v564, %v588
        %vm621 = vcmp.eq.s32.totalorder %v564, %v591
        %vm622 = vcmp.eq.s32.totalorder %v564, %v594
        %vm623 = vcmp.eq.s32.totalorder %v564, %v597
        %vm624 = vcmp.eq.s32.totalorder %v564, %v600
        %vm625 = vcmp.eq.s32.totalorder %v564, %v603
        %vm626 = vcmp.eq.s32.totalorder %v564, %v606
        %vm627 = vcmp.eq.s32.totalorder %v564, %v609
        %vm628 = vcmp.eq.s32.totalorder %v564, %v612
        %v629 = vsel %vm613, %v467, 0.0
        %v630 = vsel %vm614, %v468, 0.0
        %v631 = vsel %vm615, %v469, 0.0
        %v632 = vsel %vm616, %v470, 0.0
        %v633 = vsel %vm617, %v471, 0.0
        %v634 = vsel %vm618, %v472, 0.0
        %v635 = vsel %vm619, %v473, 0.0
        %v636 = vsel %vm620, %v474, 0.0
        %v637 = vsel %vm621, %v475, 0.0
        %v638 = vsel %vm622, %v476, 0.0
        %v639 = vsel %vm623, %v477, 0.0
        %v640 = vsel %vm624, %v478, 0.0
        %v641 = vsel %vm625, %v479, 0.0
        %v642 = vsel %vm626, %v480, 0.0
        %v643 = vsel %vm627, %v481, 0.0
        %v644 = vsel %vm628, %v482, 0.0
        %v645 = vsel %vm418, %v629, 0.0
        %646 = vadd.xlane.f32.xlu0 %v645
        %v647 = vpop.xlane.xlu0 %646
        %v648 = vsel %vm418, %v630, 0.0
        %649 = vadd.xlane.f32.xlu0 %v648
        %v650 = vpop.xlane.xlu0 %649
        %v651 = vsel %vm418, %v631, 0.0
        %652 = vadd.xlane.f32.xlu0 %v651
        %v653 = vpop.xlane.xlu0 %652
        %v654 = vsel %vm418, %v632, 0.0
        %655 = vadd.xlane.f32.xlu0 %v654
        %v656 = vpop.xlane.xlu0 %655
        %v657 = vsel %vm418, %v633, 0.0
        %658 = vadd.xlane.f32.xlu0 %v657
        %v659 = vpop.xlane.xlu0 %658
        %v660 = vsel %vm418, %v634, 0.0
        %661 = vadd.xlane.f32.xlu0 %v660
        %v662 = vpop.xlane.xlu0 %661
        %v663 = vsel %vm418, %v635, 0.0
        %664 = vadd.xlane.f32.xlu0 %v663
        %v665 = vpop.xlane.xlu0 %664
        %v666 = vsel %vm418, %v636, 0.0
        %667 = vadd.xlane.f32.xlu0 %v666
        %v668 = vpop.xlane.xlu0 %667
        %v669 = vsel %vm418, %v637, 0.0
        %670 = vadd.xlane.f32.xlu0 %v669
        %v671 = vpop.xlane.xlu0 %670
        %v672 = vsel %vm418, %v638, 0.0
        %673 = vadd.xlane.f32.xlu0 %v672
        %v674 = vpop.xlane.xlu0 %673
        %v675 = vsel %vm418, %v639, 0.0
        %676 = vadd.xlane.f32.xlu0 %v675
        %v677 = vpop.xlane.xlu0 %676
        %v678 = vsel %vm418, %v640, 0.0
        %679 = vadd.xlane.f32.xlu0 %v678
        %v680 = vpop.xlane.xlu0 %679
        %v681 = vsel %vm418, %v641, 0.0
        %682 = vadd.xlane.f32.xlu0 %v681
        %v683 = vpop.xlane.xlu0 %682
        %v684 = vsel %vm418, %v642, 0.0
        %685 = vadd.xlane.f32.xlu0 %v684
        %v686 = vpop.xlane.xlu0 %685
        %v687 = vsel %vm418, %v643, 0.0
        %688 = vadd.xlane.f32.xlu0 %v687
        %v689 = vpop.xlane.xlu0 %688
        %v690 = vsel %vm418, %v644, 0.0
        %691 = vadd.xlane.f32.xlu0 %v690
        %v692 = vpop.xlane.xlu0 %691
        %v693 = vlog2.pop %v517
        %v694 = vmul.f32 %v693, 0.6931472
        %v695 = vlog2.pop %v520
        %v696 = vmul.f32 %v695, 0.6931472
        %v697 = vlog2.pop %v523
        %v698 = vmul.f32 %v697, 0.6931472
        %v699 = vlog2.pop %v526
        %v700 = vmul.f32 %v699, 0.6931472
        %v701 = vlog2.pop %v529
        %v702 = vmul.f32 %v701, 0.6931472
        %v703 = vlog2.pop %v532
        %v704 = vmul.f32 %v703, 0.6931472
        %v705 = vlog2.pop %v535
        %v706 = vmul.f32 %v705, 0.6931472
        %v707 = vlog2.pop %v538
        %v708 = vmul.f32 %v707, 0.6931472
        %v709 = vlog2.pop %v541
        %v710 = vmul.f32 %v709, 0.6931472
        %v711 = vlog2.pop %v544
        %v712 = vmul.f32 %v711, 0.6931472
        %v713 = vlog2.pop %v547
        %v714 = vmul.f32 %v713, 0.6931472
        %v715 = vlog2.pop %v550
        %v716 = vmul.f32 %v715, 0.6931472
        %v717 = vlog2.pop %v553
        %v718 = vmul.f32 %v717, 0.6931472
        %v719 = vlog2.pop %v556
        %v720 = vmul.f32 %v719, 0.6931472
        %v721 = vlog2.pop %v559
        %v722 = vmul.f32 %v721, 0.6931472
        %v723 = vlog2.pop %v562
        %v724 = vmul.f32 %v723, 0.6931472
        %v725 = vsub.f32 %v694, %v647
        %v726 = vsub.f32 %v696, %v650
        %v727 = vsub.f32 %v698, %v653
        %v728 = vsub.f32 %v700, %v656
        %v729 = vsub.f32 %v702, %v659
        %v730 = vsub.f32 %v704, %v662
        %v731 = vsub.f32 %v706, %v665
        %v732 = vsub.f32 %v708, %v668
        %v733 = vsub.f32 %v710, %v671
        %v734 = vsub.f32 %v712, %v674
        %v735 = vsub.f32 %v714, %v677
        %v736 = vsub.f32 %v716, %v680
        %v737 = vsub.f32 %v718, %v683
        %v738 = vsub.f32 %v720, %v686
        %v739 = vsub.f32 %v722, %v689
        %v740 = vsub.f32 %v724, %v692
        %v741 = vsel %vm354, %v725, 0.0
        %v742 = vsel %vm355, %v726, 0.0
        %v743 = vsel %vm356, %v727, 0.0
        %v744 = vsel %vm357, %v728, 0.0
        %v745 = vsel %vm358, %v729, 0.0
        %v746 = vsel %vm359, %v730, 0.0
        %v747 = vsel %vm360, %v731, 0.0
        %v748 = vsel %vm361, %v732, 0.0
        %v749 = vsel %vm362, %v733, 0.0
        %v750 = vsel %vm363, %v734, 0.0
        %v751 = vsel %vm364, %v735, 0.0
        %v752 = vsel %vm365, %v736, 0.0
        %v753 = vsel %vm366, %v737, 0.0
        %v754 = vsel %vm367, %v738, 0.0
        %v755 = vsel %vm368, %v739, 0.0
        %v756 = vsel %vm369, %v740, 0.0
        %vm757 = vcmp.gt.s32.totalorder %v402, 0
        %vm758 = vcmp.gt.s32.totalorder %v403, 0
        %vm759 = vcmp.gt.s32.totalorder %v404, 0
        %vm760 = vcmp.gt.s32.totalorder %v405, 0
        %vm761 = vcmp.gt.s32.totalorder %v406, 0
        %vm762 = vcmp.gt.s32.totalorder %v407, 0
        %vm763 = vcmp.gt.s32.totalorder %v408, 0
        %vm764 = vcmp.gt.s32.totalorder %v409, 0
        %vm765 = vcmp.gt.s32.totalorder %v410, 0
        %vm766 = vcmp.gt.s32.totalorder %v411, 0
        %vm767 = vcmp.gt.s32.totalorder %v412, 0
        %vm768 = vcmp.gt.s32.totalorder %v413, 0
        %vm769 = vcmp.gt.s32.totalorder %v414, 0
        %vm770 = vcmp.gt.s32.totalorder %v415, 0
        %vm771 = vcmp.gt.s32.totalorder %v416, 0
        %vm772 = vcmp.gt.s32.totalorder %v417, 0
        %vm773 = vmand %vm354, %vm757
        %vm774 = vmand %vm355, %vm758
        %vm775 = vmand %vm356, %vm759
        %vm776 = vmand %vm357, %vm760
        %vm777 = vmand %vm358, %vm761
        %vm778 = vmand %vm359, %vm762
        %vm779 = vmand %vm360, %vm763
        %vm780 = vmand %vm361, %vm764
        %vm781 = vmand %vm362, %vm765
        %vm782 = vmand %vm363, %vm766
        %vm783 = vmand %vm364, %vm767
        %vm784 = vmand %vm365, %vm768
        %vm785 = vmand %vm366, %vm769
        %vm786 = vmand %vm367, %vm770
        %vm787 = vmand %vm368, %vm771
        %vm788 = vmand %vm369, %vm772
        %v789 = vsel %vm773, 1.0, 0.0
        %v790 = vsel %vm774, 1.0, 0.0
        %v791 = vsel %vm775, 1.0, 0.0
        %v792 = vsel %vm776, 1.0, 0.0
        %v793 = vsel %vm777, 1.0, 0.0
        %v794 = vsel %vm778, 1.0, 0.0
        %v795 = vsel %vm779, 1.0, 0.0
        %v796 = vsel %vm780, 1.0, 0.0
        %v797 = vsel %vm781, 1.0, 0.0
        %v798 = vsel %vm782, 1.0, 0.0
        %v799 = vsel %vm783, 1.0, 0.0
        %v800 = vsel %vm784, 1.0, 0.0
        %v801 = vsel %vm785, 1.0, 0.0
        %v802 = vsel %vm786, 1.0, 0.0
        %v803 = vsel %vm787, 1.0, 0.0
        %v804 = vsel %vm788, 1.0, 0.0
        %v805 = vld [vmem:[#allocation2] sm:$0x1]
        %v806 = vadd.f32 %v741, %v742
        %v807 = vadd.f32 %v806, %v743
        %v808 = vadd.f32 %v807, %v744
        %v809 = vadd.f32 %v808, %v745
        %v810 = vadd.f32 %v809, %v746
        %v811 = vadd.f32 %v810, %v747
        %v812 = vadd.f32 %v811, %v748
        %v813 = vadd.f32 %v812, %v749
        %v814 = vadd.f32 %v813, %v750
        %v815 = vadd.f32 %v814, %v751
        %v816 = vadd.f32 %v815, %v752
        %v817 = vadd.f32 %v816, %v753
        %v818 = vadd.f32 %v817, %v754
        %v819 = vadd.f32 %v818, %v755
        %v820 = vadd.f32 %v819, %v756
        %v821 = vrot.slane %v820, 4
        %v822 = vadd.f32 %v820, %v821
        %v823 = vrot.slane %v822, 2
        %v824 = vadd.f32 %v822, %v823
        %v825 = vrot.slane %v824, 1
        %v826 = vadd.f32 %v824, %v825
        %v827 = vadd.f32 %v805, %v826
        %vm828 = vcmask 0
        %829 = vst.msk [vmem:[#allocation2] sm:$0x1] %vm828, %v827
        %v830 = vld [vmem:[#allocation3] sm:$0x1]
        %vm831 = vcmask 7168
        %v832 = vsel %vm831, %v789, 0.0
        %v833 = vsel %vm831, %v790, 0.0
        %v834 = vadd.f32 %v832, %v833
        %v835 = vsel %vm831, %v791, 0.0
        %v836 = vadd.f32 %v834, %v835
        %v837 = vsel %vm831, %v792, 0.0
        %v838 = vadd.f32 %v836, %v837
        %v839 = vsel %vm831, %v793, 0.0
        %v840 = vadd.f32 %v838, %v839
        %v841 = vsel %vm831, %v794, 0.0
        %v842 = vadd.f32 %v840, %v841
        %v843 = vsel %vm831, %v795, 0.0
        %v844 = vadd.f32 %v842, %v843
        %v845 = vsel %vm831, %v796, 0.0
        %v846 = vadd.f32 %v844, %v845
        %v847 = vsel %vm831, %v797, 0.0
        %v848 = vadd.f32 %v846, %v847
        %v849 = vsel %vm831, %v798, 0.0
        %v850 = vadd.f32 %v848, %v849
        %v851 = vsel %vm831, %v799, 0.0
        %v852 = vadd.f32 %v850, %v851
        %v853 = vsel %vm831, %v800, 0.0
        %v854 = vadd.f32 %v852, %v853
        %v855 = vsel %vm831, %v801, 0.0
        %v856 = vadd.f32 %v854, %v855
        %v857 = vsel %vm831, %v802, 0.0
        %v858 = vadd.f32 %v856, %v857
        %v859 = vsel %vm831, %v803, 0.0
        %v860 = vadd.f32 %v858, %v859
        %v861 = vsel %vm831, %v804, 0.0
        %v862 = vadd.f32 %v860, %v861
        %v863 = vrot.slane %v862, 4
        %v864 = vadd.f32 %v862, %v863
        %v865 = vrot.slane %v864, 2
        %v866 = vadd.f32 %v864, %v865
        %v867 = vrot.slane %v866, 1
        %v868 = vadd.f32 %v866, %v867
        %v869 = vadd.f32 %v830, %v868
        %870 = vst.msk [vmem:[#allocation3] sm:$0x1] %vm828, %v869
        %p871 = scmp.eq.s32.totalorder %s26, 1
        // Predicated region
        $region33: #{tpu_custom_call.1} parent=27 // pred_check
          %p872 = pneg %p871
        $region34: #{tpu_custom_call.1} parent=27 // pred_check_branch
          %874 = sbr.rel (%p872) target = $region36
        $region35: #{tpu_custom_call.1} parent=27 // pred_region
          %v875 = vld [vmem:[#allocation2] sm:$0x1]
          %877 = vset.pattern.permute.xlu0 0
          %878 = vperm.xlu0 %877, %v875
          %v879 = vpop.permute.xlu0 %878
          %v881 = vlaneseq
          %v882 = vshrl.u32 %v881, 7
          %v883 = vsub.s32 0, %v882
          %v884 = vrot.slane %v879, %v883
          %885 = vst [vmem:[%s259] sm:$0x1] %v884
          %v886 = vld [vmem:[#allocation3] sm:$0x1]
          %888 = vset.pattern.permute.xlu0 0
          %889 = vperm.xlu0 %888, %v886
          %v890 = vpop.permute.xlu0 %889
          %v892 = vlaneseq
          %v893 = vshrl.u32 %v892, 7
          %v894 = vsub.s32 0, %v893
          %v895 = vrot.slane %v890, %v894
          %896 = vst [vmem:[%s265] sm:$0x1] %v895
        $region36: #{tpu_custom_call.1} parent=27 // pred_fallthru
          _
        %s897 = sand.u32 %s109, 1
        %s898 = scalar_lea.sflag [#allocation5], %s897
        %s899 = sand.u32 %s109, 1
        %s900 = scalar_lea.vmem [#allocation4], %s899
        %s901 = sand.u32 %s135, 1
        %s902 = scalar_lea.sflag [#allocation7], %s901
        %s903 = sand.u32 %s135, 1
        %s904 = scalar_lea.vmem [#allocation6], %s903
        // Predicated region
        $region37: #{tpu_custom_call.1} parent=27 // pred_check
          %p905 = pneg %p119
        $region38: #{tpu_custom_call.1} parent=27 // pred_check_branch
          %907 = sbr.rel (%p905) target = $region40
        $region39: #{tpu_custom_call.1} parent=27 // pred_region
          %s909 = ssub.s32 16, 16
          %910 = vsyncadd %s898, %s909
          %s911 = smul.addr %s25, 16
          %s912 = scalar_lea.hbm %s2, %s911
          %s914 = sshll.u32 %s900, 4
          %s915 = int_to_ptr.vmem [resolvable:$true] %s914
          %917 = dma.vmem_to_hbm [thread:$0]  %s915, 16, %s912, %s898
        $region40: #{tpu_custom_call.1} parent=27 // pred_fallthru
          _
        // Predicated region
        $region41: #{tpu_custom_call.1} parent=27 // pred_check
          %p918 = pneg %p145
        $region42: #{tpu_custom_call.1} parent=27 // pred_check_branch
          %920 = sbr.rel (%p918) target = $region44
        $region43: #{tpu_custom_call.1} parent=27 // pred_region
          %s922 = ssub.s32 16, 16
          %923 = vsyncadd %s902, %s922
          %s924 = smul.addr %s25, 16
          %s925 = scalar_lea.hbm %s3, %s924
          %s927 = sshll.u32 %s904, 4
          %s928 = int_to_ptr.vmem [resolvable:$true] %s927
          %930 = dma.vmem_to_hbm [thread:$0]  %s928, 16, %s925, %s902
        $region44: #{tpu_custom_call.1} parent=27 // pred_fallthru
          _
      $region28: #{tpu_custom_call.1} parent=5 // pred_fallthru
        _
      %p931 = scmp.le.s32.totalorder 2, %s16
      // Predicated region
      $region45: #{tpu_custom_call.1} parent=5 // pred_check
        %p932 = pneg %p931
      $region46: #{tpu_custom_call.1} parent=5 // pred_check_branch
        %934 = sbr.rel (%p932) target = $region48
      $region47: #{tpu_custom_call.1} parent=5 // pred_region
        %s935 = ssub.s32 %s16, 2
        // Predicated region
        $region49: #{tpu_custom_call.1} parent=47 // pred_check
          %p936 = pneg %p125
        $region50: #{tpu_custom_call.1} parent=47 // pred_check_branch
          %938 = sbr.rel (%p936) target = $region52
        $region51: #{tpu_custom_call.1} parent=47 // pred_region
          %s939 = sand.u32 %s110, 1
          %s940 = scalar_lea.sflag [#allocation5], %s939
          %s941 = sand.u32 %s110, 1
          %s942 = scalar_lea.vmem [#allocation4], %s941
          %943 = dma.done %s940, 16
        $region52: #{tpu_custom_call.1} parent=47 // pred_fallthru
          _
        // Predicated region
        $region53: #{tpu_custom_call.1} parent=47 // pred_check
          %p944 = pneg %p151
        $region54: #{tpu_custom_call.1} parent=47 // pred_check_branch
          %946 = sbr.rel (%p944) target = $region56
        $region55: #{tpu_custom_call.1} parent=47 // pred_region
          %s947 = sand.u32 %s136, 1
          %s948 = scalar_lea.sflag [#allocation7], %s947
          %s949 = sand.u32 %s136, 1
          %s950 = scalar_lea.vmem [#allocation6], %s949
          %951 = dma.done %s948, 16
        $region56: #{tpu_custom_call.1} parent=47 // pred_fallthru
          _
      $region48: #{tpu_custom_call.1} parent=5 // pred_fallthru
        _
    $region6: #{tpu_custom_call.1} parent=1 // loop_footer
      %s20 = sadd.s32 1, %s16
    $region7: #{tpu_custom_call.1} parent=1 // loop_footer_branch
      %15 = sbr.rel target = $region3
    $region8: #{tpu_custom_call.1} parent=1 // loop_exit
      _
    %952 = vsyncpa [#allocation5], 1
    %s953 = scalar_lea.sflag [#allocation5], 1
    %954 = vsyncpa %s953, 1
    %955 = vsyncpa [#allocation7], 1
    %s956 = scalar_lea.sflag [#allocation7], 1
    %957 = vsyncpa %s956, 1

</llo_original>
